<compile_context>
chip_gen: v7x
topology: tpu7x:2x2x1
jax: 0.10.0
libtpu: 0.0.40
codegen_flags: <defaults>
</compile_context>

<pallas_src>
import functools
import numpy as np
import jax
import jax.numpy as jnp
from jax import lax
from jax.experimental import pallas as pl
from jax.experimental.pallas import tpu as pltpu

FILT_SIZE = 3
STRIDE = 2
PAD = (FILT_SIZE - 1) // 2  # reflection pad of 1 on each side (pad_off = 0)


def _filter_1d(filt_size=3):
    table = {1: [1.0], 2: [1.0, 1.0], 3: [1.0, 2.0, 1.0],
             4: [1.0, 3.0, 3.0, 1.0], 5: [1.0, 4.0, 6.0, 4.0, 1.0],
             6: [1.0, 5.0, 10.0, 10.0, 5.0, 1.0],
             7: [1.0, 6.0, 15.0, 20.0, 15.0, 6.0, 1.0]}
    a = np.asarray(table[filt_size], dtype=np.float64)
    return (a / a.sum()).astype(np.float32)  # per-axis factor of the 2-D blur


def _reflect(i, n):
    # ReflectionPad2d index rule (valid because pad < n for filt_size=3).
    if i < 0:
        return -i
    if i >= n:
        return 2 * (n - 1) - i
    return i


@functools.lru_cache(maxsize=None)
def _folded_selection_mats(H, W, filt_size=FILT_SIZE, stride=STRIDE):
    """R (Ho,H) and Cm (W,Wo): reflection pad + stride-2 gather + separable
    blur taps folded into two small constant matrices, so y[c] = R @ x[c] @ Cm."""
    a = _filter_1d(filt_size)
    pad = (filt_size - 1) // 2
    Ho = (H + 2 * pad - filt_size) // stride + 1
    Wo = (W + 2 * pad - filt_size) // stride + 1
    R = np.zeros((Ho, H), np.float32)
    for i in range(Ho):
        for kh in range(filt_size):
            R[i, _reflect(stride * i + kh - pad, H)] += a[kh]
    Cm = np.zeros((W, Wo), np.float32)
    for j in range(Wo):
        for kw in range(filt_size):
            Cm[_reflect(stride * j + kw - pad, W), j] += a[kw]
    return R, Cm


def downsample_kernel(x_ref, r_ref, c_ref, o_ref, t_ref):
    # x_ref: (TG, H, W)    input tile; TG = fused batch*channel slots
    # r_ref: (Ho, H)       folded row operator (blur + stride-2 + reflect)
    # c_ref: (W, Wo)       folded column operator
    # o_ref: (TG, Ho, Wo)  output tile
    # t_ref: (TG, H, Wo)   VMEM scratch holding the column-pass result
    tg, H, W = x_ref.shape
    Ho, Wo = o_ref.shape[1], o_ref.shape[2]

    # Small constant operands, loaded once per grid step (hoisted out of loops).
    r = r_ref[...]            # (Ho, H)
    cm = c_ref[...]           # (W, Wo)

    if H % 8 == 0:
        # Column pass: ONE un-batched GEMM.  The (TG,H,W)->(TG*H,W) collapse is
        # a free, sublane-tile-aligned reshape because H % 8 == 0.
        x2d = x_ref[...].reshape(tg * H, W)
        t = jnp.dot(x2d, cm, preferred_element_type=jnp.float32)       # (TG*H, Wo)
        t_ref[...] = t.reshape(tg, H, Wo)                              # free split

        # Row pass: per-slot (Ho,H)@(H,Wo) with R as a single shared operand.
        # No materialized broadcast of R; rolled loop keeps code size bounded
        # for large TG.
        @pl.loop(0, tg)
        def _(ci):
            o_ref[ci] = jnp.dot(
                r, t_ref[ci], preferred_element_type=jnp.float32
            ).astype(o_ref.dtype)
    else:
        # H not sublane-aligned: skip the collapse (it would force a full-tile
        # VMEM relayout) and run both passes per slot instead.
        @pl.loop(0, tg)
        def _(ci):
            t_c = jnp.dot(x_ref[ci], cm, preferred_element_type=jnp.float32)
            o_ref[ci] = jnp.dot(
                r, t_c, preferred_element_type=jnp.float32
            ).astype(o_ref.dtype)


def _vmem_capacity_bytes():
    """Per-core VMEM capacity; conservative 64 MiB (v7x) fallback."""
    try:
        info = pltpu.get_tpu_info()
        cap = getattr(info, "vmem_capacity_bytes", None)
        if cap:
            return int(cap)
    except Exception:
        pass
    return 64 << 20


def _pick_group_tile(G, H, W, Ho, Wo, vmem_budget_bytes):
    """Largest divisor of G=N*C whose per-step footprint fits the VMEM budget.
    Footprint: double-buffered input/output blocks + column-pass scratch +
    the in-flight row-pass result; constants (R, Cm) are tiny and subtracted
    as a fixed cost."""
    fixed = 4 * 2 * (Ho * H + W * Wo)                 # double-buffered constants
    budget = max(1, vmem_budget_bytes - fixed)
    per_g = 4 * (2 * H * W + 2 * Ho * Wo + H * Wo + Ho * Wo)
    cap = max(1, budget // per_g)

    divisors = [d for d in range(1, G + 1) if G % d == 0]
    fitting = [d for d in divisors if d <= cap]
    tg = max(fitting) if fitting else 1

    # If everything fits in a single step, still prefer >=2 steps (pipeline
    # overlap / v7x megacore) -- but only when each step keeps moving >= ~2 MiB
    # of HBM traffic, so the ~0.35 us per-step overhead stays negligible.
    min_step_bytes = 2 << 20
    if tg == G and G > 1:
        cands = [d for d in fitting
                 if d < G and d * 4 * (H * W + Ho * Wo) >= min_step_bytes]
        if cands:
            tg = max(cands)
    return tg


def downsample(x, filt_size=FILT_SIZE):
    """Anti-aliased stride-2 downsample (Downsample.forward), NCHW float32."""
    N, C, H, W = x.shape
    pad = (filt_size - 1) // 2
    Ho = (H + 2 * pad - filt_size) // STRIDE + 1
    Wo = (W + 2 * pad - filt_size) // STRIDE + 1

    R_np, Cm_np = _folded_selection_mats(H, W, filt_size, STRIDE)
    R = jnp.asarray(R_np)      # (Ho, H)  -- not replicated over channels
    Cm = jnp.asarray(Cm_np)    # (W, Wo)

    # Fuse batch and channel into one grid axis: free merge of leading dims.
    G = N * C
    x_flat = x.reshape(G, H, W)

    vmem_cap = _vmem_capacity_bytes()
    vmem_budget = vmem_cap // 3          # ~21 MiB on v7x, ~42 MiB on v5e/v6e
    vmem_limit = (vmem_cap * 3) // 4     # ~48 MiB on v7x, ~96 MiB on v5e/v6e

    TG = _pick_group_tile(G, H, W, Ho, Wo, vmem_budget)
    grid = (G // TG,)

    out_flat = pl.pallas_call(
        downsample_kernel,
        out_shape=jax.ShapeDtypeStruct((G, Ho, Wo), x.dtype),
        grid_spec=pltpu.PrefetchScalarGridSpec(
            num_scalar_prefetch=0,
            grid=grid,
            in_specs=[
                pl.BlockSpec((TG, H, W), lambda g: (g, 0, 0)),
                # Constant operators: same block every step.
                pl.BlockSpec((Ho, H), lambda g: (0, 0)),
                pl.BlockSpec((W, Wo), lambda g: (0, 0)),
            ],
            out_specs=pl.BlockSpec((TG, Ho, Wo), lambda g: (g, 0, 0)),
            scratch_shapes=[pltpu.VMEM((TG, H, Wo), jnp.float32)],
        ),
        compiler_params=pltpu.CompilerParams(
            dimension_semantics=("parallel",),
            vmem_limit_bytes=int(vmem_limit),
        ),
    )(x_flat, R, Cm)

    return out_flat.reshape(N, C, Ho, Wo)


def downsample_ref(x, filt):
    """Pure-JAX reference: reflect-pad + depthwise stride-2 conv (== PyTorch)."""
    x_pad = jnp.pad(x, ((0, 0), (0, 0), (PAD, PAD), (PAD, PAD)), mode="reflect")
    return lax.conv_general_dilated(
        x_pad, jnp.asarray(filt, jnp.float32),
        window_strides=(STRIDE, STRIDE), padding="VALID",
        feature_group_count=x.shape[1],
        dimension_numbers=("NCHW", "OIHW", "NCHW"))


if __name__ == "__main__":
    key = jax.random.PRNGKey(0)
    N, C, H, W = 2, 4, 16, 16
    x = jax.random.normal(key, (N, C, H, W), dtype=jnp.float32)

    # Deterministic buffer init, same as the module's __init__ (filt_size=3).
    a = _filter_1d(FILT_SIZE)
    filt2d = a[:, None] * a[None, :]                                   # (3, 3), sums to 1
    filt = np.broadcast_to(filt2d[None, None],
                           (C, 1, FILT_SIZE, FILT_SIZE)).copy()        # (C, 1, 3, 3)

    out = downsample(x)
    out = jax.block_until_ready(out)

    ref = downsample_ref(x, filt)
    np.testing.assert_allclose(np.asarray(out), np.asarray(ref),
                               rtol=1e-5, atol=1e-5)
    print("KERNEL_OK")
</pallas_src>

<mosaic_0001>
module attributes {stable_mosaic.version = 11 : i64} {
  func.func @downsample_kernel(%arg0: i32, %arg1: memref<8x16x16xf32, #tpu.memory_space<vmem>>, %arg2: memref<8x16xf32, #tpu.memory_space<vmem>>, %arg3: memref<16x8xf32, #tpu.memory_space<vmem>>, %arg4: memref<8x8x8xf32, #tpu.memory_space<vmem>>, %arg5: memref<8x16x8xf32, #tpu.memory_space<vmem>>) attributes {dimension_semantics = [#tpu.dimension_semantics<parallel>], iteration_bounds = array<i64: 1>, scalar_prefetch = 0 : i64, scratch_operands = 1 : i64, tpu.core_type = #tpu.core_type<tc>, window_params = [{transform_indices = @transform_0, window_bounds = array<i64: 8, 16, 16>}, {pipeline_mode = #tpu.pipeline_mode<synchronous>, transform_indices = @transform_1, window_bounds = array<i64: 8, 16>}, {pipeline_mode = #tpu.pipeline_mode<synchronous>, transform_indices = @transform_2, window_bounds = array<i64: 16, 8>}, {transform_indices = @transform_3, window_bounds = array<i64: 8, 8, 8>}]} {
    %c0 = arith.constant 0 : index
    %c0_0 = arith.constant 0 : index
    %0 = vector.load %arg2[%c0, %c0_0] : memref<8x16xf32, #tpu.memory_space<vmem>>, vector<8x16xf32>
    %c0_1 = arith.constant 0 : index
    %c0_2 = arith.constant 0 : index
    %1 = vector.load %arg3[%c0_1, %c0_2] : memref<16x8xf32, #tpu.memory_space<vmem>>, vector<16x8xf32>
    %c0_3 = arith.constant 0 : index
    %c0_4 = arith.constant 0 : index
    %c0_5 = arith.constant 0 : index
    %2 = vector.load %arg1[%c0_3, %c0_4, %c0_5] : memref<8x16x16xf32, #tpu.memory_space<vmem>>, vector<8x16x16xf32>
    %3 = vector.shape_cast %2 : vector<8x16x16xf32> to vector<128x16xf32>
    %cst = arith.constant dense<0.000000e+00> : vector<128x8xf32>
    %4 = tpu.matmul %3, %1, %cst {dimension_numbers = #tpu.dot_dimension_numbers<[1], [0], [0], [1], [0, 0, 1, 1], [], []>} : vector<128x16xf32>, vector<16x8xf32>, vector<128x8xf32> -> vector<128x8xf32>
    %5 = vector.shape_cast %4 : vector<128x8xf32> to vector<8x16x8xf32>
    %c0_6 = arith.constant 0 : index
    %c0_7 = arith.constant 0 : index
    %c0_8 = arith.constant 0 : index
    %6 = vector.load %arg5[%c0_6, %c0_7, %c0_8] : memref<8x16x8xf32, #tpu.memory_space<vmem>>, vector<8x16x8xf32>
    tpu.vector_store %arg5[%c0_6, %c0_7, %c0_8], %5 {strides = array<i32>} : memref<8x16x8xf32, #tpu.memory_space<vmem>>, vector<8x16x8xf32>,
    %c0_i32 = arith.constant 0 : i32
    %c8_i32 = arith.constant 8 : i32
    %7 = arith.addi %c0_i32, %c8_i32 : i32
    %c1_i32 = arith.constant 1 : i32
    scf.for %arg6 = %c0_i32 to %7 step %c1_i32  : i32 {
      %c1_i32_10 = arith.constant 1 : i32
      %8 = arith.muli %arg6, %c1_i32_10 : i32
      %c0_i32_11 = arith.constant 0 : i32
      %9 = arith.addi %c0_i32_11, %8 : i32
      %10 = arith.index_cast %9 : i32 to index
      %c0_12 = arith.constant 0 : index
      %c0_13 = arith.constant 0 : index
      %11 = vector.load %arg5[%10, %c0_12, %c0_13] : memref<8x16x8xf32, #tpu.memory_space<vmem>>, vector<1x16x8xf32>
      %12 = vector.shape_cast %11 : vector<1x16x8xf32> to vector<16x8xf32>
      %cst_14 = arith.constant dense<0.000000e+00> : vector<8x8xf32>
      %13 = tpu.matmul %0, %12, %cst_14 {dimension_numbers = #tpu.dot_dimension_numbers<[1], [0], [0], [1], [0, 0, 1, 1], [], []>} : vector<8x16xf32>, vector<16x8xf32>, vector<8x8xf32> -> vector<8x8xf32>
      %14 = arith.index_cast %9 : i32 to index
      %c0_15 = arith.constant 0 : index
      %c0_16 = arith.constant 0 : index
      %15 = vector.load %arg4[%14, %c0_15, %c0_16] : memref<8x8x8xf32, #tpu.memory_space<vmem>>, vector<1x8x8xf32>
      %16 = vector.shape_cast %15 : vector<1x8x8xf32> to vector<8x8xf32>
      %17 = vector.shape_cast %13 : vector<8x8xf32> to vector<1x8x8xf32>
      tpu.vector_store %arg4[%14, %c0_15, %c0_16], %17 {strides = array<i32>} : memref<8x8x8xf32, #tpu.memory_space<vmem>>, vector<1x8x8xf32>,
    }
    %c8_i32_9 = arith.constant 8 : i32
    return
  }
  func.func @transform_0(%arg0: i32) -> (i32, i32, i32) {
    %c0_i32 = arith.constant 0 : i32
    %c0_i32_0 = arith.constant 0 : i32
    %c0_i32_1 = arith.constant 0 : i32
    return %arg0, %c0_i32, %c0_i32_0 : i32, i32, i32
  }
  func.func @transform_1(%arg0: i32) -> (i32, i32) {
    %c0_i32 = arith.constant 0 : i32
    %c0_i32_0 = arith.constant 0 : i32
    %c0_i32_1 = arith.constant 0 : i32
    return %c0_i32, %c0_i32_0 : i32, i32
  }
  func.func @transform_2(%arg0: i32) -> (i32, i32) {
    %c0_i32 = arith.constant 0 : i32
    %c0_i32_0 = arith.constant 0 : i32
    %c0_i32_1 = arith.constant 0 : i32
    return %c0_i32, %c0_i32_0 : i32, i32
  }
  func.func @transform_3(%arg0: i32) -> (i32, i32, i32) {
    %c0_i32 = arith.constant 0 : i32
    %c0_i32_0 = arith.constant 0 : i32
    %c0_i32_1 = arith.constant 0 : i32
    return %arg0, %c0_i32, %c0_i32_0 : i32, i32, i32
  }
}

</mosaic_0001>

<llo_original>
// kernel: tpu_custom_call.1
$region0: #{tpu_custom_call.1}
  #allocation0 [shape = 'u32[]', space=smem, size = 0x4, offset = 0x4, fixed_abs, tag = 'smem constant byte address 0x4 - core index']
  #allocation1 [shape = 'u32[144,128]{1,0:T(1,128)}', space=vmem, size = 0x12000, scoped, tag = 'internal scratch']
  #allocation2 [shape = 'f32[8,16,8]{2,1,0:T(8,128)}', space=vmem, size = 0x10000, scoped, tag = 'scratch operand']
  %s0 = inlined_call_operand.hbm [shape: f32[8,16,16], index: 0, kind: input, shape index: {}]
  %s1 = inlined_call_operand.vmem [shape: f32[8,16], index: 1, kind: input, shape index: {}]
  %s2 = inlined_call_operand.vmem [shape: f32[16,8], index: 2, kind: input, shape index: {}]
  %s3 = inlined_call_operand.hbm [shape: f32[8,8,8], index: 3, kind: output, shape index: {}]
  %s4 = sld [smem:[#allocation0]]
  $region33: #{tpu_custom_call.1} parent=0
    _
  %s6 = ssub.s32 1, %s4
  %s7 = scalar_select 0, %s6, %s4
  $region1: #{tpu_custom_call.1} parent=0
    #allocation3 [shape = 'u8[65536]{0}', space=vmem, size = 0x10000, scoped, tag = 'input window, operand 0, single buffered']
    #allocation4 [shape = 's32[1]{0}', space=sflag, size = 0x4, scoped, tag = 'scoped memory for tpu_custom_call.1']
    #allocation5 [shape = 's32[1]{0}', space=sflag, size = 0x4, scoped, tag = 'scoped memory for tpu_custom_call.1']
    #allocation6 [shape = 'u8[32768]{0}', space=vmem, size = 0x8000, scoped, tag = 'output window, operand 0, single buffered']
    %8 = vsyncpa [#allocation4], 0
    %9 = vsyncpa [#allocation5], 0
    // Predicated region
    $region2: #{tpu_custom_call.1} parent=1 // pred_check
      _
    $region3: #{tpu_custom_call.1} parent=1 // pred_check_branch
      %11 = sbr.rel (0) target = $region5
    $region4: #{tpu_custom_call.1} parent=1 // pred_region
      %s13 = ssub.s32 2048, 2048
      %14 = vsyncadd [#allocation4], %s13
      %s15 = sshll.u32 [#allocation3], 4
      %s16 = int_to_ptr.vmem [resolvable:$true] %s15
      %21 = dma.hbm_to_vmem [thread:$0]  %s0, 2048, %s16, [#allocation4], 128, 128, 8
    $region5: #{tpu_custom_call.1} parent=1 // pred_fallthru
      _
    // Predicated region
    $region6: #{tpu_custom_call.1} parent=1 // pred_check
      _
    $region7: #{tpu_custom_call.1} parent=1 // pred_check_branch
      %23 = sbr.rel (0) target = $region9
    $region8: #{tpu_custom_call.1} parent=1 // pred_region
      _
    $region9: #{tpu_custom_call.1} parent=1 // pred_fallthru
      _
    // Predicated region
    $region10: #{tpu_custom_call.1} parent=1 // pred_check
      _
    $region11: #{tpu_custom_call.1} parent=1 // pred_check_branch
      %25 = sbr.rel (0) target = $region13
    $region12: #{tpu_custom_call.1} parent=1 // pred_region
      _
    $region13: #{tpu_custom_call.1} parent=1 // pred_fallthru
      _
    // Predicated region
    $region14: #{tpu_custom_call.1} parent=1 // pred_check
      _
    $region15: #{tpu_custom_call.1} parent=1 // pred_check_branch
      %27 = sbr.rel (0) target = $region17
    $region16: #{tpu_custom_call.1} parent=1 // pred_region
      %28 = dma.done [#allocation4], 2048
    $region17: #{tpu_custom_call.1} parent=1 // pred_fallthru
      _
    %v29 = vld [vmem:[%s1] sm:$0xff]
    %v30 = vld [vmem:[%s2] sm:$0xff]
    %v31 = vld [vmem:[%s2 + $0x8] sm:$0xff]
    %v32 = vld [vmem:[#allocation3] sm:$0xff]
    %v33 = vld [vmem:[#allocation3 + $0x8] sm:$0xff]
    %v34 = vld [vmem:[#allocation3 + $0x10] sm:$0xff]
    %v35 = vld [vmem:[#allocation3 + $0x18] sm:$0xff]
    %v36 = vld [vmem:[#allocation3 + $0x20] sm:$0xff]
    %v37 = vld [vmem:[#allocation3 + $0x28] sm:$0xff]
    %v38 = vld [vmem:[#allocation3 + $0x30] sm:$0xff]
    %v39 = vld [vmem:[#allocation3 + $0x38] sm:$0xff]
    %v40 = vld [vmem:[#allocation3 + $0x40] sm:$0xff]
    %v41 = vld [vmem:[#allocation3 + $0x48] sm:$0xff]
    %v42 = vld [vmem:[#allocation3 + $0x50] sm:$0xff]
    %v43 = vld [vmem:[#allocation3 + $0x58] sm:$0xff]
    %v44 = vld [vmem:[#allocation3 + $0x60] sm:$0xff]
    %v45 = vld [vmem:[#allocation3 + $0x68] sm:$0xff]
    %v46 = vld [vmem:[#allocation3 + $0x70] sm:$0xff]
    %v47 = vld [vmem:[#allocation3 + $0x78] sm:$0xff]
    %vm48 = vcmask 130048
    %v50 = vsel %vm48, %v32, 0
    %v53 = vsel %vm48, %v33, 0
    %v56 = vsel %vm48, %v34, 0
    %v59 = vsel %vm48, %v35, 0
    %v62 = vsel %vm48, %v36, 0
    %v65 = vsel %vm48, %v37, 0
    %v68 = vsel %vm48, %v38, 0
    %v71 = vsel %vm48, %v39, 0
    %v74 = vsel %vm48, %v40, 0
    %v77 = vsel %vm48, %v41, 0
    %v80 = vsel %vm48, %v42, 0
    %v83 = vsel %vm48, %v43, 0
    %v86 = vsel %vm48, %v44, 0
    %v89 = vsel %vm48, %v45, 0
    %v92 = vsel %vm48, %v46, 0
    %v95 = vsel %vm48, %v47, 0
    %97 = vmatprep.subr.mxu0 0.0
    %98 = vmatpush1.msra.mxu0 %v30
    %99 = vmatprep.subr.mxu0 0.0
    %100 = vmatpush1.msra.mxu0 %v31
    %101 = vmatprep.subr.mxu0 0.0
    %102 = vmatpush1.msra.mxu0 0.0
    %103 = vmatprep.subr.mxu0 0.0
    %104 = vmatpush1.msra.mxu0 0.0
    %105 = vmatprep.subr.mxu0 0.0
    %106 = vmatpush1.msra.mxu0 0.0
    %107 = vmatprep.subr.mxu0 0.0
    %108 = vmatpush1.msra.mxu0 0.0
    %109 = vmatprep.subr.mxu0 0.0
    %110 = vmatpush1.msra.mxu0 0.0
    %111 = vmatprep.subr.mxu0 0.0
    %112 = vmatpush1.msra.mxu0 0.0
    %113 = vmatprep.subr.mxu0 0.0
    %114 = vmatpush1.msra.mxu0 0.0
    %115 = vmatprep.subr.mxu0 0.0
    %116 = vmatpush1.msra.mxu0 0.0
    %117 = vmatprep.subr.mxu0 0.0
    %118 = vmatpush1.msra.mxu0 0.0
    %119 = vmatprep.subr.mxu0 0.0
    %120 = vmatpush1.msra.mxu0 0.0
    %121 = vmatprep.subr.mxu0 0.0
    %122 = vmatpush1.msra.mxu0 0.0
    %123 = vmatprep.subr.mxu0 0.0
    %124 = vmatpush1.msra.mxu0 0.0
    %125 = vmatprep.subr.mxu0 0.0
    %126 = vmatpush1.msra.mxu0 0.0
    %127 = vmatprep.subr.mxu0 0.0
    %128 = vmatpush1.msra.mxu0 0.0
    %129 = vmatprep.subr.mxu0 0.0
    %130 = vmatpush1.msra.mxu0 0.0
    %131 = vmatprep.subr.mxu0 0.0
    %132 = vmatpush1.msra.mxu0 0.0
    %133 = vmatprep.subr.mxu0 0.0
    %134 = vmatpush1.msra.mxu0 0.0
    %135 = vmatprep.subr.mxu0 0.0
    %136 = vmatpush1.msra.mxu0 0.0
    %137 = vmatprep.subr.mxu0 0.0
    %138 = vmatpush1.msra.mxu0 0.0
    %139 = vmatprep.subr.mxu0 0.0
    %140 = vmatpush1.msra.mxu0 0.0
    %141 = vmatprep.subr.mxu0 0.0
    %142 = vmatpush1.msra.mxu0 0.0
    %143 = vmatprep.subr.mxu0 0.0
    %144 = vmatpush1.msra.mxu0 0.0
    %145 = vmatprep.subr.mxu0 0.0
    %146 = vmatpush1.msra.mxu0 0.0
    %147 = vmatprep.subr.mxu0 0.0
    %148 = vmatpush1.msra.mxu0 0.0
    %149 = vmatprep.subr.mxu0 0.0
    %150 = vmatpush1.msra.mxu0 0.0
    %151 = vmatprep.subr.mxu0 0.0
    %152 = vmatpush1.msra.mxu0 0.0
    %153 = vmatprep.subr.mxu0 0.0
    %154 = vmatpush1.msra.mxu0 0.0
    %155 = vmatprep.subr.mxu0 0.0
    %156 = vmatpush1.msra.mxu0 0.0
    %157 = vmatprep.subr.mxu0 0.0
    %158 = vmatpush1.msra.mxu0 0.0
    %159 = vmatprep.subr.mxu0 0.0
    %160 = vmatpush1.msra.mxu0 0.0
    %161 = vmatprep.mubr.f32.mxu0 0.0
    %162 = vmatmul.mubr.f32.gmra.mrb[0].mxu0 %v50
    %v163 = vpop.f32.mrb[0].mxu0
    %v164 = vadd.f32 0.0, %v163
    %v165 = vpop.f32.mrb[0].mxu0
    %166 = vmatprep.mubr.f32.mxu0 0.0
    %167 = vmatmul.mubr.f32.gmra.mrb[0].mxu0 %v53
    %v168 = vpop.f32.mrb[0].mxu0
    %v169 = vadd.f32 0.0, %v168
    %v170 = vpop.f32.mrb[0].mxu0
    %171 = vmatprep.mubr.f32.mxu0 0.0
    %172 = vmatmul.mubr.f32.gmra.mrb[0].mxu0 %v56
    %v173 = vpop.f32.mrb[0].mxu0
    %v174 = vadd.f32 0.0, %v173
    %v175 = vpop.f32.mrb[0].mxu0
    %176 = vmatprep.mubr.f32.mxu0 0.0
    %177 = vmatmul.mubr.f32.gmra.mrb[0].mxu0 %v59
    %v178 = vpop.f32.mrb[0].mxu0
    %v179 = vadd.f32 0.0, %v178
    %v180 = vpop.f32.mrb[0].mxu0
    %181 = vmatprep.mubr.f32.mxu0 0.0
    %182 = vmatmul.mubr.f32.gmra.mrb[0].mxu0 %v62
    %v183 = vpop.f32.mrb[0].mxu0
    %v184 = vadd.f32 0.0, %v183
    %v185 = vpop.f32.mrb[0].mxu0
    %186 = vmatprep.mubr.f32.mxu0 0.0
    %187 = vmatmul.mubr.f32.gmra.mrb[0].mxu0 %v65
    %v188 = vpop.f32.mrb[0].mxu0
    %v189 = vadd.f32 0.0, %v188
    %v190 = vpop.f32.mrb[0].mxu0
    %191 = vmatprep.mubr.f32.mxu0 0.0
    %192 = vmatmul.mubr.f32.gmra.mrb[0].mxu0 %v68
    %v193 = vpop.f32.mrb[0].mxu0
    %v194 = vadd.f32 0.0, %v193
    %v195 = vpop.f32.mrb[0].mxu0
    %196 = vmatprep.mubr.f32.mxu0 0.0
    %197 = vmatmul.mubr.f32.gmra.mrb[0].mxu0 %v71
    %v198 = vpop.f32.mrb[0].mxu0
    %v199 = vadd.f32 0.0, %v198
    %v200 = vpop.f32.mrb[0].mxu0
    %201 = vmatprep.mubr.f32.mxu0 0.0
    %202 = vmatmul.mubr.f32.gmra.mrb[0].mxu0 %v74
    %v203 = vpop.f32.mrb[0].mxu0
    %v204 = vadd.f32 0.0, %v203
    %v205 = vpop.f32.mrb[0].mxu0
    %206 = vmatprep.mubr.f32.mxu0 0.0
    %207 = vmatmul.mubr.f32.gmra.mrb[0].mxu0 %v77
    %v208 = vpop.f32.mrb[0].mxu0
    %v209 = vadd.f32 0.0, %v208
    %v210 = vpop.f32.mrb[0].mxu0
    %211 = vmatprep.mubr.f32.mxu0 0.0
    %212 = vmatmul.mubr.f32.gmra.mrb[0].mxu0 %v80
    %v213 = vpop.f32.mrb[0].mxu0
    %v214 = vadd.f32 0.0, %v213
    %v215 = vpop.f32.mrb[0].mxu0
    %216 = vmatprep.mubr.f32.mxu0 0.0
    %217 = vmatmul.mubr.f32.gmra.mrb[0].mxu0 %v83
    %v218 = vpop.f32.mrb[0].mxu0
    %v219 = vadd.f32 0.0, %v218
    %v220 = vpop.f32.mrb[0].mxu0
    %221 = vmatprep.mubr.f32.mxu0 0.0
    %222 = vmatmul.mubr.f32.gmra.mrb[0].mxu0 %v86
    %v223 = vpop.f32.mrb[0].mxu0
    %v224 = vadd.f32 0.0, %v223
    %v225 = vpop.f32.mrb[0].mxu0
    %226 = vmatprep.mubr.f32.mxu0 0.0
    %227 = vmatmul.mubr.f32.gmra.mrb[0].mxu0 %v89
    %v228 = vpop.f32.mrb[0].mxu0
    %v229 = vadd.f32 0.0, %v228
    %v230 = vpop.f32.mrb[0].mxu0
    %231 = vmatprep.mubr.f32.mxu0 0.0
    %232 = vmatmul.mubr.f32.gmra.mrb[0].mxu0 %v92
    %v233 = vpop.f32.mrb[0].mxu0
    %v234 = vadd.f32 0.0, %v233
    %v235 = vpop.f32.mrb[0].mxu0
    %236 = vmatprep.mubr.f32.mxu0 0.0
    %237 = vmatmul.mubr.f32.gmra.mrb[0].mxu0 %v95
    %v238 = vpop.f32.mrb[0].mxu0
    %v239 = vadd.f32 0.0, %v238
    %v240 = vpop.f32.mrb[0].mxu0
    %241 = vdwg.mxu0
    %vm242 = vcmask 64512
    %243 = vst.msk [vmem:[#allocation2] sm:$0xff] %vm242, %v164
    %244 = vst.msk [vmem:[#allocation2 + $0x8] sm:$0xff] %vm242, %v169
    %245 = vst.msk [vmem:[#allocation2 + $0x10] sm:$0xff] %vm242, %v174
    %246 = vst.msk [vmem:[#allocation2 + $0x18] sm:$0xff] %vm242, %v179
    %247 = vst.msk [vmem:[#allocation2 + $0x20] sm:$0xff] %vm242, %v184
    %248 = vst.msk [vmem:[#allocation2 + $0x28] sm:$0xff] %vm242, %v189
    %249 = vst.msk [vmem:[#allocation2 + $0x30] sm:$0xff] %vm242, %v194
    %250 = vst.msk [vmem:[#allocation2 + $0x38] sm:$0xff] %vm242, %v199
    %251 = vst.msk [vmem:[#allocation2 + $0x40] sm:$0xff] %vm242, %v204
    %252 = vst.msk [vmem:[#allocation2 + $0x48] sm:$0xff] %vm242, %v209
    %253 = vst.msk [vmem:[#allocation2 + $0x50] sm:$0xff] %vm242, %v214
    %254 = vst.msk [vmem:[#allocation2 + $0x58] sm:$0xff] %vm242, %v219
    %255 = vst.msk [vmem:[#allocation2 + $0x60] sm:$0xff] %vm242, %v224
    %256 = vst.msk [vmem:[#allocation2 + $0x68] sm:$0xff] %vm242, %v229
    %257 = vst.msk [vmem:[#allocation2 + $0x70] sm:$0xff] %vm242, %v234
    %258 = vst.msk [vmem:[#allocation2 + $0x78] sm:$0xff] %vm242, %v239
    loop: start=0, step=1, limit=8
    $region18: #{tpu_custom_call.1} parent=1 // loop_pre_header
      _
    $region19: #{tpu_custom_call.1} parent=1 // loop_header
      %s260 = sphi 0, %s264
      %p261 = scmp.ge.s32.totalorder %s260, 8
    $region20: #{tpu_custom_call.1} parent=1 // loop_header_branch
      %263 = sbr.rel (%p261) target = $region24
    $region21: #{tpu_custom_call.1} parent=1 // loop_body
      %s265 = smul.u32 %s260, 16
      %s266 = scalar_lea.vmem [#allocation2], %s265
      %v267 = vld [vmem:[%s266] sm:$0xff]
      %v268 = vld [vmem:[%s266 + $0x8] sm:$0xff]
      %v270 = vsel %vm48, %v29, 0
      %272 = vmatprep.subr.mxu0 0.0
      %273 = vmatpush1.msra.mxu0 %v267
      %274 = vmatprep.subr.mxu0 0.0
      %275 = vmatpush1.msra.mxu0 %v268
      %276 = vmatprep.subr.mxu0 0.0
      %277 = vmatpush1.msra.mxu0 0.0
      %278 = vmatprep.subr.mxu0 0.0
      %279 = vmatpush1.msra.mxu0 0.0
      %280 = vmatprep.subr.mxu0 0.0
      %281 = vmatpush1.msra.mxu0 0.0
      %282 = vmatprep.subr.mxu0 0.0
      %283 = vmatpush1.msra.mxu0 0.0
      %284 = vmatprep.subr.mxu0 0.0
      %285 = vmatpush1.msra.mxu0 0.0
      %286 = vmatprep.subr.mxu0 0.0
      %287 = vmatpush1.msra.mxu0 0.0
      %288 = vmatprep.subr.mxu0 0.0
      %289 = vmatpush1.msra.mxu0 0.0
      %290 = vmatprep.subr.mxu0 0.0
      %291 = vmatpush1.msra.mxu0 0.0
      %292 = vmatprep.subr.mxu0 0.0
      %293 = vmatpush1.msra.mxu0 0.0
      %294 = vmatprep.subr.mxu0 0.0
      %295 = vmatpush1.msra.mxu0 0.0
      %296 = vmatprep.subr.mxu0 0.0
      %297 = vmatpush1.msra.mxu0 0.0
      %298 = vmatprep.subr.mxu0 0.0
      %299 = vmatpush1.msra.mxu0 0.0
      %300 = vmatprep.subr.mxu0 0.0
      %301 = vmatpush1.msra.mxu0 0.0
      %302 = vmatprep.subr.mxu0 0.0
      %303 = vmatpush1.msra.mxu0 0.0
      %304 = vmatprep.subr.mxu0 0.0
      %305 = vmatpush1.msra.mxu0 0.0
      %306 = vmatprep.subr.mxu0 0.0
      %307 = vmatpush1.msra.mxu0 0.0
      %308 = vmatprep.subr.mxu0 0.0
      %309 = vmatpush1.msra.mxu0 0.0
      %310 = vmatprep.subr.mxu0 0.0
      %311 = vmatpush1.msra.mxu0 0.0
      %312 = vmatprep.subr.mxu0 0.0
      %313 = vmatpush1.msra.mxu0 0.0
      %314 = vmatprep.subr.mxu0 0.0
      %315 = vmatpush1.msra.mxu0 0.0
      %316 = vmatprep.subr.mxu0 0.0
      %317 = vmatpush1.msra.mxu0 0.0
      %318 = vmatprep.subr.mxu0 0.0
      %319 = vmatpush1.msra.mxu0 0.0
      %320 = vmatprep.subr.mxu0 0.0
      %321 = vmatpush1.msra.mxu0 0.0
      %322 = vmatprep.subr.mxu0 0.0
      %323 = vmatpush1.msra.mxu0 0.0
      %324 = vmatprep.subr.mxu0 0.0
      %325 = vmatpush1.msra.mxu0 0.0
      %326 = vmatprep.subr.mxu0 0.0
      %327 = vmatpush1.msra.mxu0 0.0
      %328 = vmatprep.subr.mxu0 0.0
      %329 = vmatpush1.msra.mxu0 0.0
      %330 = vmatprep.subr.mxu0 0.0
      %331 = vmatpush1.msra.mxu0 0.0
      %332 = vmatprep.subr.mxu0 0.0
      %333 = vmatpush1.msra.mxu0 0.0
      %334 = vmatprep.subr.mxu0 0.0
      %335 = vmatpush1.msra.mxu0 0.0
      %336 = vmatprep.mubr.f32.mxu0 0.0
      %337 = vmatmul.mubr.f32.gmra.mrb[0].mxu0 %v270
      %v338 = vpop.f32.mrb[0].mxu0
      %v339 = vadd.f32 0.0, %v338
      %v340 = vpop.f32.mrb[0].mxu0
      %341 = vdwg.mxu0
      %s342 = smul.u32 %s260, 8
      %s343 = scalar_lea.vmem [#allocation6], %s342
      %344 = vst.msk [vmem:[%s343] sm:$0xff] %vm242, %v339
    $region22: #{tpu_custom_call.1} parent=1 // loop_footer
      %s264 = sadd.s32 1, %s260
    $region23: #{tpu_custom_call.1} parent=1 // loop_footer_branch
      %259 = sbr.rel target = $region19
    $region24: #{tpu_custom_call.1} parent=1 // loop_exit
      _
    // Predicated region
    $region25: #{tpu_custom_call.1} parent=1 // pred_check
      _
    $region26: #{tpu_custom_call.1} parent=1 // pred_check_branch
      %346 = sbr.rel (0) target = $region28
    $region27: #{tpu_custom_call.1} parent=1 // pred_region
      %s348 = ssub.s32 1024, 1024
      %349 = vsyncadd [#allocation5], %s348
      %s350 = sshll.u32 [#allocation6], 4
      %s351 = int_to_ptr.vmem [resolvable:$true] %s350
      %356 = dma.vmem_to_hbm [thread:$0]  %s351, 1024, %s3, [#allocation5], 128, 128, 8
    $region28: #{tpu_custom_call.1} parent=1 // pred_fallthru
      _
    // Predicated region
    $region29: #{tpu_custom_call.1} parent=1 // pred_check
      _
    $region30: #{tpu_custom_call.1} parent=1 // pred_check_branch
      %358 = sbr.rel (0) target = $region32
    $region31: #{tpu_custom_call.1} parent=1 // pred_region
      %359 = dma.done [#allocation5], 1024
    $region32: #{tpu_custom_call.1} parent=1 // pred_fallthru
      _
    %360 = vsyncpa [#allocation4], 1
    %361 = vsyncpa [#allocation5], 1

</llo_original>
